<compile_context>
chip_gen: v6e
topology: v6e:2x2x1
jax: 0.10.0
libtpu: 0.0.40
codegen_flags: <defaults>
</compile_context>

<pallas_src>
import jax
import jax.numpy as jnp
from jax.experimental import pallas as pl
from jax.experimental.pallas import tpu as pltpu


_TARGET_BLOCK_BYTES = 4 * 1024 * 1024      # ~4 MiB per block (fits all gens)
_VMEM_FLOOR = 32 * 1024 * 1024             # scoped-VMEM request floor
_VMEM_CEIL = 64 * 1024 * 1024              # never ask beyond v7x per-TC VMEM


def _sublane_multiple(dtype) -> int:
    """Minimum second-minor tile for this dtype: (8,128) f32, (16,128) bf16, (32,128) int8/fp8."""
    itemsize = jnp.dtype(dtype).itemsize
    return {4: 8, 2: 16, 1: 32}.get(itemsize, 8)


def _copy_kernel(x_ref, o_ref):
    # Pure passthrough of the current (block_n, T*C) tile.
    o_ref[...] = x_ref[...]


def waveform_featurizer_forward(waveforms):
    """Identity featurizer forward pass (WaveformFeaturizer.forward).

    Implemented as a minimal-traffic tiled HBM copy through Pallas:
    one read pass + one write pass, no pad / slice / extra reshapes.
    (The mathematically optimal implementation is `return waveforms`.)
    """
    n, t, c = waveforms.shape
    row = t * c

    # Degenerate sizes: nothing to move, skip Pallas entirely.
    if n == 0 or row == 0:
        return waveforms

    itemsize = jnp.dtype(waveforms.dtype).itemsize
    row_bytes = row * itemsize
    total_bytes = n * row_bytes
    sub = _sublane_multiple(waveforms.dtype)

    # Free, contiguous reshape: (N, T, C) -> (N, T*C).  Last dim is the full
    # array extent, so no (x,128) divisibility constraint and no padding.
    x2d = waveforms.reshape(n, row)

    if n < 4 * sub:
        # Small spike counts: a single block covering the whole array.
        # Both block dims equal the full array dims -> legal for any dtype.
        block_n = n
    else:
        # ~4 MiB blocks, rounded down to the dtype's sublane multiple.
        target = max(sub, _TARGET_BLOCK_BYTES // max(row_bytes, 1))
        block_n = max(sub, (target // sub) * sub)
        # Cap so the grid has >= 4 steps (>= 2 per v7x TensorCore): megacore
        # sharding + double-buffer overlap need multiple grid steps.
        cap = max(sub, (n // 4 // sub) * sub)
        block_n = min(block_n, cap)

    grid = pl.cdiv(n, block_n)
    block_bytes = block_n * row_bytes
    # 2 double-buffered buffers per operand (in + out) plus headroom.
    vmem_limit = min(_VMEM_CEIL, max(_VMEM_FLOOR, 4 * block_bytes + 2 * 1024 * 1024))

    out2d = pl.pallas_call(
        _copy_kernel,
        out_shape=jax.ShapeDtypeStruct((n, row), waveforms.dtype),
        grid_spec=pltpu.PrefetchScalarGridSpec(
            num_scalar_prefetch=0,
            grid=(grid,),
            # block_n is a sublane multiple (or the full extent) and the last
            # dim is the full array extent -> always a legal TPU tiling.
            # Partial boundary blocks (n % block_n != 0) are masked by Pallas.
            in_specs=[pl.BlockSpec((block_n, row), lambda i: (i, 0))],
            out_specs=pl.BlockSpec((block_n, row), lambda i: (i, 0)),
        ),
        compiler_params=pltpu.CompilerParams(
            dimension_semantics=("parallel",),   # megacore-shard on v7x
            vmem_limit_bytes=vmem_limit,
        ),
        cost_estimate=pl.CostEstimate(
            flops=0,
            transcendentals=0,
            bytes_accessed=2 * total_bytes,      # exact: no padding passes
        ),
    )(x2d)

    # Free reshape back to (N, spike_length_samples, C).
    return out2d.reshape(n, t, c)


class WaveformFeaturizer:
    """JAX mirror of dartsort.transform.base.WaveformFeaturizer."""

    default_name = ""
    is_featurizer = True
    is_denoiser = False
    needs_fit = False

    def __init__(self, channel_index, spike_length_samples=121,
                 dtype=jnp.float32, name=None):
        self.name = name if name is not None else self.default_name
        # channel_index / max_channels are unused by forward(), matching the
        # PyTorch module's identity forward.
        self.shape = (spike_length_samples, channel_index.shape[1])
        self.dtype = dtype

    def fit(self, waveforms, max_channels=None):
        pass

    def forward(self, waveforms, max_channels=None):
        return waveform_featurizer_forward(waveforms)

    __call__ = forward


if __name__ == "__main__":
    key = jax.random.PRNGKey(0)

    # Small, deterministic synthetic setup consistent with the module:
    # channel_index: (n_total_channels, n_neighborhood_channels)
    spike_length_samples = 16
    n_total_channels = 12
    n_neighborhood = 8
    n_spikes = 64          # row = 16*8 = 128 -> 4 full grid steps of 16 spikes

    k_ci, k_w = jax.random.split(key)
    channel_index = jax.random.randint(
        k_ci, (n_total_channels, n_neighborhood), 0, n_total_channels,
        dtype=jnp.int32)

    featurizer = WaveformFeaturizer(
        channel_index, spike_length_samples=spike_length_samples,
        dtype=jnp.float32, name="waveforms")

    waveforms = jax.random.normal(
        k_w, (n_spikes, spike_length_samples, n_neighborhood),
        dtype=jnp.float32)

    out = featurizer(waveforms)
    out = jax.block_until_ready(out)

    assert out.shape == waveforms.shape
    assert out.dtype == waveforms.dtype
    assert out.shape[1:] == featurizer.shape
    assert jnp.array_equal(out, waveforms)

    print("KERNEL_OK")
</pallas_src>

<mosaic_0001>
module attributes {stable_mosaic.version = 11 : i64} {
  func.func @_copy_kernel(%arg0: i32, %arg1: memref<16x128xf32, #tpu.memory_space<vmem>>, %arg2: memref<16x128xf32, #tpu.memory_space<vmem>>) attributes {dimension_semantics = [#tpu.dimension_semantics<parallel>], iteration_bounds = array<i64: 4>, scalar_prefetch = 0 : i64, scratch_operands = 0 : i64, tpu.core_type = #tpu.core_type<tc>, window_params = [{transform_indices = @transform_0, window_bounds = array<i64: 16, 128>}, {transform_indices = @transform_1, window_bounds = array<i64: 16, 128>}]} {
    %c0 = arith.constant 0 : index
    %c0_0 = arith.constant 0 : index
    %0 = vector.load %arg1[%c0, %c0_0] : memref<16x128xf32, #tpu.memory_space<vmem>>, vector<16x128xf32>
    %c0_1 = arith.constant 0 : index
    %c0_2 = arith.constant 0 : index
    %1 = vector.load %arg2[%c0_1, %c0_2] : memref<16x128xf32, #tpu.memory_space<vmem>>, vector<16x128xf32>
    tpu.vector_store %arg2[%c0_1, %c0_2], %0 {strides = array<i32>} : memref<16x128xf32, #tpu.memory_space<vmem>>, vector<16x128xf32>,
    return
  }
  func.func @transform_0(%arg0: i32) -> (i32, i32) {
    %c0_i32 = arith.constant 0 : i32
    %c0_i32_0 = arith.constant 0 : i32
    return %arg0, %c0_i32 : i32, i32
  }
  func.func @transform_1(%arg0: i32) -> (i32, i32) {
    %c0_i32 = arith.constant 0 : i32
    %c0_i32_0 = arith.constant 0 : i32
    return %arg0, %c0_i32 : i32, i32
  }
}

</mosaic_0001>

<llo_original>
// kernel: tpu_custom_call.1
$region0: #{tpu_custom_call.1}
  #allocation0 [shape = 'u32[]', space=smem, size = 0x4, offset = 0x4, fixed_abs, tag = 'smem constant byte address 0x4 - core index']
  #allocation1 [shape = 'u32[144,128]{1,0:T(1,128)}', space=vmem, size = 0x12000, scoped, tag = 'internal scratch']
  %s0 = inlined_call_operand.hbm [shape: f32[64,128], index: 0, kind: input, shape index: {}]
  %s1 = inlined_call_operand.hbm [shape: f32[64,128], index: 1, kind: output, shape index: {}]
  %s2 = sld [smem:[#allocation0]]
  $region41: #{tpu_custom_call.1} parent=0
    _
  %s4 = ssub.s32 1, %s2
  %s5 = scalar_select 0, %s4, %s2
  $region1: #{tpu_custom_call.1} parent=0
    #allocation2 [shape = 'u8[16384]{0}', space=vmem, size = 0x4000, scoped, tag = 'input window, operand 0']
    #allocation3 [shape = 's32[2]{0}', space=sflag, size = 0x8, scoped, tag = 'scoped memory for tpu_custom_call.1']
    #allocation4 [shape = 's32[2]{0}', space=sflag, size = 0x8, scoped, tag = 'scoped memory for tpu_custom_call.1']
    #allocation5 [shape = 'u8[16384]{0}', space=vmem, size = 0x4000, scoped, tag = 'output window, operand 0']
    %6 = vsyncpa [#allocation3], 0
    %s7 = scalar_lea.sflag [#allocation3], 1
    %8 = vsyncpa %s7, 0
    %9 = vsyncpa [#allocation4], 0
    %s10 = scalar_lea.sflag [#allocation4], 1
    %11 = vsyncpa %s10, 0
    loop: start=0, step=1, limit=6
    $region2: #{tpu_custom_call.1} parent=1 // loop_pre_header
      _
    $region3: #{tpu_custom_call.1} parent=1 // loop_header
      %s13 = sphi 0, %s17
      %p14 = scmp.ge.s32.totalorder %s13, 6
      %s23 = sphi 0, %s25
      %s26 = sphi 0, %s23
      %s27 = sphi 0, %s26
      %s43 = sphi 0, %s27
      %s49 = sphi 0, %s51
      %s52 = sphi 0, %s49
      %s53 = sphi 0, %s52
      %s69 = sphi 0, %s53
    $region4: #{tpu_custom_call.1} parent=1 // loop_header_branch
      %16 = sbr.rel (%p14) target = $region8
    $region5: #{tpu_custom_call.1} parent=1 // loop_body
      %s18 = ssub.s32 %s13, 1
      %s19 = ssub.s32 %s13, 2
      %s20 = sadd.s32 %s13, 1
      %s21 = ssub.s32 %s13, %s20
      %p22 = scmp.eq.s32.totalorder %s21, 0
      %s24 = sadd.s32 %s23, 1
      %s25 = scalar_select %p22, %s23, %s24
      %p28 = pneg %p22
      %p29 = scmp.eq.s32.totalorder %s13, 3
      %p30 = por %p28, %p29
      %p31 = scmp.ne.s32.totalorder %s23, %s26
      %p32 = scmp.eq.s32.totalorder %s13, 0
      %p33 = por %p31, %p32
      %p34 = scmp.ne.s32.totalorder %s23, %s26
      %p35 = scmp.eq.s32.totalorder %s18, 3
      %p36 = por %p34, %p35
      %p37 = scmp.ne.s32.totalorder %s26, %s27
      %p38 = scmp.eq.s32.totalorder %s18, 0
      %p39 = por %p37, %p38
      %p40 = scmp.ne.s32.totalorder %s26, %s27
      %p41 = scmp.eq.s32.totalorder %s19, 3
      %p42 = por %p40, %p41
      %p44 = scmp.ne.s32.totalorder %s27, %s43
      %p45 = scmp.eq.s32.totalorder %s19, 0
      %p46 = por %p44, %p45
      %s47 = ssub.s32 %s13, %s20
      %p48 = scmp.eq.s32.totalorder %s47, 0
      %s50 = sadd.s32 %s49, 1
      %s51 = scalar_select %p48, %s49, %s50
      %p54 = pneg %p48
      %p55 = scmp.eq.s32.totalorder %s13, 3
      %p56 = por %p54, %p55
      %p57 = scmp.ne.s32.totalorder %s49, %s52
      %p58 = scmp.eq.s32.totalorder %s13, 0
      %p59 = por %p57, %p58
      %p60 = scmp.ne.s32.totalorder %s49, %s52
      %p61 = scmp.eq.s32.totalorder %s18, 3
      %p62 = por %p60, %p61
      %p63 = scmp.ne.s32.totalorder %s52, %s53
      %p64 = scmp.eq.s32.totalorder %s18, 0
      %p65 = por %p63, %p64
      %p66 = scmp.ne.s32.totalorder %s52, %s53
      %p67 = scmp.eq.s32.totalorder %s19, 3
      %p68 = por %p66, %p67
      %p70 = scmp.ne.s32.totalorder %s53, %s69
      %p71 = scmp.eq.s32.totalorder %s19, 0
      %p72 = por %p70, %p71
      %p73 = scmp.le.s32.totalorder 1, %s13
      %p74 = scmp.lt.s32.totalorder %s13, 5
      %p75 = pnand %p73, %p74
      %p76 = pneg %p75
      // Predicated region
      $region9: #{tpu_custom_call.1} parent=5 // pred_check
        _
      $region10: #{tpu_custom_call.1} parent=5 // pred_check_branch
        %78 = sbr.rel (%p75) target = $region12
      $region11: #{tpu_custom_call.1} parent=5 // pred_region
        %s79 = ssub.s32 %s13, 1
      $region12: #{tpu_custom_call.1} parent=5 // pred_fallthru
        _
      %p80 = scmp.lt.s32.totalorder %s13, 4
      // Predicated region
      $region13: #{tpu_custom_call.1} parent=5 // pred_check
        %p81 = pneg %p80
      $region14: #{tpu_custom_call.1} parent=5 // pred_check_branch
        %83 = sbr.rel (%p81) target = $region16
      $region15: #{tpu_custom_call.1} parent=5 // pred_region
        // Predicated region
        $region17: #{tpu_custom_call.1} parent=15 // pred_check
          %p84 = pneg %p33
        $region18: #{tpu_custom_call.1} parent=15 // pred_check_branch
          %86 = sbr.rel (%p84) target = $region20
        $region19: #{tpu_custom_call.1} parent=15 // pred_region
          %s87 = sand.u32 %s23, 1
          %s88 = scalar_lea.sflag [#allocation3], %s87
          %s89 = sand.u32 %s23, 1
          %s90 = smul.addr %s89, 16
          %s91 = scalar_lea.vmem [#allocation2], %s90
          %s92 = smul.u32 2, %s13
          %s94 = ssub.s32 256, 256
          %95 = vsyncadd %s88, %s94
          %s96 = smul.addr %s92, 128
          %s97 = scalar_lea.hbm %s0, %s96
          %s98 = sshll.u32 %s91, 4
          %s99 = int_to_ptr.vmem [resolvable:$true] %s98
          %104 = dma.hbm_to_vmem [thread:$0]  %s97, 256, %s99, %s88, 128, 128, 8
        $region20: #{tpu_custom_call.1} parent=15 // pred_fallthru
          _
      $region16: #{tpu_custom_call.1} parent=5 // pred_fallthru
        _
      %p105 = scmp.le.s32.totalorder 1, %s13
      %p106 = scmp.lt.s32.totalorder %s13, 5
      %p107 = pnand %p105, %p106
      %p108 = pneg %p107
      // Predicated region
      $region21: #{tpu_custom_call.1} parent=5 // pred_check
        _
      $region22: #{tpu_custom_call.1} parent=5 // pred_check_branch
        %110 = sbr.rel (%p107) target = $region24
      $region23: #{tpu_custom_call.1} parent=5 // pred_region
        %s111 = ssub.s32 %s13, 1
        %s112 = sand.u32 %s26, 1
        %s113 = scalar_lea.sflag [#allocation3], %s112
        %s114 = sand.u32 %s26, 1
        %s115 = smul.addr %s114, 16
        %s116 = scalar_lea.vmem [#allocation2], %s115
        // Predicated region
        $region25: #{tpu_custom_call.1} parent=23 // pred_check
          %p117 = pneg %p39
        $region26: #{tpu_custom_call.1} parent=23 // pred_check_branch
          %119 = sbr.rel (%p117) target = $region28
        $region27: #{tpu_custom_call.1} parent=23 // pred_region
          %120 = dma.done %s113, 256
        $region28: #{tpu_custom_call.1} parent=23 // pred_fallthru
          _
        %s121 = sand.u32 %s26, 1
        %s122 = scalar_lea.sflag [#allocation3], %s121
        %s123 = sand.u32 %s26, 1
        %s124 = smul.addr %s123, 16
        %s125 = scalar_lea.vmem [#allocation2], %s124
        %p126 = pneg %p39
        %p127 = pneg %p36
        %p128 = pneg %p65
        %p129 = pneg %p62
        %s130 = sand.u32 %s52, 1
        %s131 = scalar_lea.sflag [#allocation4], %s130
        %s132 = sand.u32 %s52, 1
        %s133 = smul.addr %s132, 16
        %s134 = scalar_lea.vmem [#allocation5], %s133
        %s135 = smul.u32 2, %s18
        %s136 = smul.u32 2, %s18
        %v137 = vld [vmem:[%s116] sm:$0xff]
        %v138 = vld [vmem:[%s116 + $0x8] sm:$0xff]
        %139 = vst [vmem:[%s134] sm:$0xff] %v137
        %140 = vst [vmem:[%s134 + $0x8] sm:$0xff] %v138
        %s141 = sand.u32 %s52, 1
        %s142 = scalar_lea.sflag [#allocation4], %s141
        %s143 = sand.u32 %s52, 1
        %s144 = smul.addr %s143, 16
        %s145 = scalar_lea.vmem [#allocation5], %s144
        // Predicated region
        $region29: #{tpu_custom_call.1} parent=23 // pred_check
          %p146 = pneg %p62
        $region30: #{tpu_custom_call.1} parent=23 // pred_check_branch
          %148 = sbr.rel (%p146) target = $region32
        $region31: #{tpu_custom_call.1} parent=23 // pred_region
          %s149 = smul.u32 2, %s18
          %s151 = ssub.s32 256, 256
          %152 = vsyncadd %s142, %s151
          %s153 = smul.addr %s149, 128
          %s154 = scalar_lea.hbm %s1, %s153
          %s155 = sshll.u32 %s145, 4
          %s156 = int_to_ptr.vmem [resolvable:$true] %s155
          %161 = dma.vmem_to_hbm [thread:$0]  %s156, 256, %s154, %s142, 128, 128, 8
        $region32: #{tpu_custom_call.1} parent=23 // pred_fallthru
          _
      $region24: #{tpu_custom_call.1} parent=5 // pred_fallthru
        _
      %p162 = scmp.le.s32.totalorder 2, %s13
      // Predicated region
      $region33: #{tpu_custom_call.1} parent=5 // pred_check
        %p163 = pneg %p162
      $region34: #{tpu_custom_call.1} parent=5 // pred_check_branch
        %165 = sbr.rel (%p163) target = $region36
      $region35: #{tpu_custom_call.1} parent=5 // pred_region
        %s166 = ssub.s32 %s13, 2
        // Predicated region
        $region37: #{tpu_custom_call.1} parent=35 // pred_check
          %p167 = pneg %p68
        $region38: #{tpu_custom_call.1} parent=35 // pred_check_branch
          %169 = sbr.rel (%p167) target = $region40
        $region39: #{tpu_custom_call.1} parent=35 // pred_region
          %s170 = sand.u32 %s53, 1
          %s171 = scalar_lea.sflag [#allocation4], %s170
          %s172 = sand.u32 %s53, 1
          %s173 = smul.addr %s172, 16
          %s174 = scalar_lea.vmem [#allocation5], %s173
          %175 = dma.done %s171, 256
        $region40: #{tpu_custom_call.1} parent=35 // pred_fallthru
          _
      $region36: #{tpu_custom_call.1} parent=5 // pred_fallthru
        _
    $region6: #{tpu_custom_call.1} parent=1 // loop_footer
      %s17 = sadd.s32 1, %s13
    $region7: #{tpu_custom_call.1} parent=1 // loop_footer_branch
      %12 = sbr.rel target = $region3
    $region8: #{tpu_custom_call.1} parent=1 // loop_exit
      _
    %176 = vsyncpa [#allocation3], 1
    %s177 = scalar_lea.sflag [#allocation3], 1
    %178 = vsyncpa %s177, 1
    %179 = vsyncpa [#allocation4], 1
    %s180 = scalar_lea.sflag [#allocation4], 1
    %181 = vsyncpa %s180, 1

</llo_original>
